<compile_context>
chip_gen: v7x
topology: tpu7x:2x2x1
jax: 0.10.0
libtpu: 0.0.40
codegen_flags: <defaults>
</compile_context>

<pallas_src>
import functools

import jax
import jax.numpy as jnp
from jax.experimental import pallas as pl
from jax.experimental.pallas import tpu as pltpu


# --------------------------- kernels ---------------------------

def _scse_fused_kernel(x_ref, w1_ref, b1_ref, w2_ref, b2_ref, ws_ref, bs_ref,
                       o_ref, *, inv_hw):
    """One pass over the per-image slab: mean -> cSE MLP -> sSE -> combine."""
    x = x_ref[0]                                              # (C, HWp) f32

    # cSE gate. Padded columns are zero, so the sum is exact; divide by true HW.
    pooled = jnp.sum(x, axis=-1, keepdims=True) * inv_hw       # (C, 1)
    h = jnp.maximum(
        jnp.dot(w1_ref[...], pooled, preferred_element_type=jnp.float32)
        + b1_ref[...], 0.0)                                    # (mid, 1)
    gate = jax.nn.sigmoid(
        jnp.dot(w2_ref[...], h, preferred_element_type=jnp.float32)
        + b2_ref[...])                                         # (C, 1)

    # sSE: per-pixel 1x1 conv (C -> C) + sigmoid on the MXU.
    sse = jax.nn.sigmoid(
        jnp.dot(ws_ref[...], x, preferred_element_type=jnp.float32)
        + bs_ref[...])                                         # (C, HWp)

    # x*cSE + x*sSE == x*(cSE + sSE): one full-tile VPU multiply.
    o_ref[0] = x * (gate + sse)


def _scse_tiled_kernel(x_ref, gate_ref, ws_ref, bs_ref, o_ref):
    """Split path: cSE gate precomputed in XLA; stream big HW tiles."""
    x = x_ref[0]                                               # (C, T)
    sse = jax.nn.sigmoid(
        jnp.dot(ws_ref[...], x, preferred_element_type=jnp.float32)
        + bs_ref[...])
    o_ref[0] = x * (gate_ref[0] + sse)


# --------------------------- wrapper ---------------------------

_VMEM_LIMIT_BYTES = 32 << 20   # scoped-VMEM request; safe on v5e/v6e/v7x
_DATA_BUDGET_BYTES = 24 << 20  # budget for the double-buffered (in+out) x blocks


def _round_up(x, m):
    return ((x + m - 1) // m) * m


def scse_forward(x_nchw, w1, b1, w2, b2, ws, bs):
    """x_nchw: (N, C, H, W) float32. Weights follow PyTorch Conv2d 1x1 layout
    (out_ch, in_ch) after squeezing the 1x1 spatial dims."""
    N, C, H, W = x_nchw.shape
    HW = H * W
    f32 = jnp.float32

    x = x_nchw.reshape(N, C, HW).astype(f32)   # free reshape, no transpose

    mid = w1.shape[0]
    w1_f = w1.astype(f32)
    b1_c = b1.reshape(mid, 1).astype(f32)
    w2_f = w2.astype(f32)
    b2_c = b2.reshape(C, 1).astype(f32)
    ws_f = ws.astype(f32)
    bs_c = bs.reshape(C, 1).astype(f32)

    # Largest lane extent such that 2*(in+out) f32 buffers fit the data budget.
    per_col = 4 * C * 4
    max_tile = max(128, (_DATA_BUDGET_BYTES // per_col) // 128 * 128)
    hw128 = _round_up(HW, 128)

    if hw128 <= max_tile:
        # ---------- fused single-pass path: x is read from HBM exactly once ----------
        HWp = hw128
        xp = x if HWp == HW else jnp.pad(x, ((0, 0), (0, 0), (0, HWp - HW)))
        kernel = functools.partial(_scse_fused_kernel, inv_hw=1.0 / HW)

        out = pl.pallas_call(
            kernel,
            out_shape=jax.ShapeDtypeStruct((N, C, HWp), f32),
            grid_spec=pltpu.PrefetchScalarGridSpec(
                num_scalar_prefetch=0,
                grid=(N,),
                in_specs=[
                    pl.BlockSpec((1, C, HWp), lambda n: (n, 0, 0)),   # x (streamed)
                    pl.BlockSpec((mid, C),    lambda n: (0, 0)),      # cSE conv1 W
                    pl.BlockSpec((mid, 1),    lambda n: (0, 0)),      # cSE conv1 b
                    pl.BlockSpec((C, mid),    lambda n: (0, 0)),      # cSE conv2 W
                    pl.BlockSpec((C, 1),      lambda n: (0, 0)),      # cSE conv2 b
                    pl.BlockSpec((C, C),      lambda n: (0, 0)),      # sSE W (resident)
                    pl.BlockSpec((C, 1),      lambda n: (0, 0)),      # sSE b (resident)
                ],
                out_specs=pl.BlockSpec((1, C, HWp), lambda n: (n, 0, 0)),
            ),
            compiler_params=pltpu.CompilerParams(
                dimension_semantics=("parallel",),
                vmem_limit_bytes=_VMEM_LIMIT_BYTES),
        )(xp, w1_f, b1_c, w2_f, b2_c, ws_f, bs_c)
    else:
        # ---------- split fallback: huge per-image slab; gate via XLA, big tiles ------
        pooled = jnp.mean(x, axis=-1)                                    # (N, C)
        h = jnp.maximum(pooled @ w1_f.T + b1.astype(f32), 0.0)           # (N, mid)
        gate = jax.nn.sigmoid(h @ w2_f.T + b2.astype(f32))               # (N, C)
        gate = gate[:, :, None].astype(f32)                              # (N, C, 1)

        ntiles = -(-hw128 // max_tile)                 # ceil
        T = _round_up(-(-hw128 // ntiles), 128)        # balanced tile, mult of 128
        HWp = T * ntiles
        xp = x if HWp == HW else jnp.pad(x, ((0, 0), (0, 0), (0, HWp - HW)))

        out = pl.pallas_call(
            _scse_tiled_kernel,
            out_shape=jax.ShapeDtypeStruct((N, C, HWp), f32),
            grid_spec=pltpu.PrefetchScalarGridSpec(
                num_scalar_prefetch=0,
                grid=(N, ntiles),
                in_specs=[
                    pl.BlockSpec((1, C, T), lambda n, t: (n, 0, t)),   # x (streamed)
                    pl.BlockSpec((1, C, 1), lambda n, t: (n, 0, 0)),   # cSE gate
                    pl.BlockSpec((C, C),    lambda n, t: (0, 0)),      # sSE W
                    pl.BlockSpec((C, 1),    lambda n, t: (0, 0)),      # sSE b
                ],
                out_specs=pl.BlockSpec((1, C, T), lambda n, t: (n, 0, t)),
            ),
            compiler_params=pltpu.CompilerParams(
                dimension_semantics=("parallel", "parallel"),
                vmem_limit_bytes=_VMEM_LIMIT_BYTES),
        )(xp, gate, ws_f, bs_c)

    if HWp != HW:
        out = out[:, :, :HW]
    return out.reshape(N, C, H, W)


# --------------------------- reference ---------------------------

def scse_reference(x_nchw, w1, b1, w2, b2, ws, bs):
    """Pure-JAX reference mirroring the PyTorch forward (NCHW)."""
    pooled = jnp.mean(x_nchw, axis=(2, 3))                               # (N, C)
    h = jnp.maximum(pooled @ w1.T + b1, 0.0)                             # (N, mid)
    cse = jax.nn.sigmoid(h @ w2.T + b2)[:, :, None, None]                # (N, C, 1, 1)
    sse = jax.nn.sigmoid(
        jnp.einsum('nchw,oc->nohw', x_nchw, ws) + bs[None, :, None, None])
    return x_nchw * cse + x_nchw * sse


if __name__ == "__main__":
    key = jax.random.PRNGKey(0)
    N, C, H, W = 2, 32, 16, 16
    re = 16
    mid = C // re  # = 2

    k = jax.random.split(key, 7)
    x = jax.random.normal(k[0], (N, C, H, W), dtype=jnp.float32)

    # Deterministic synthetic parameters (PyTorch Conv2d 1x1 shapes, squeezed).
    w1 = jax.random.normal(k[1], (mid, C), dtype=jnp.float32) * 0.2   # cSE conv1
    b1 = jax.random.normal(k[2], (mid,), dtype=jnp.float32) * 0.1
    w2 = jax.random.normal(k[3], (C, mid), dtype=jnp.float32) * 0.2   # cSE conv2
    b2 = jax.random.normal(k[4], (C,), dtype=jnp.float32) * 0.1
    ws = jax.random.normal(k[5], (C, C), dtype=jnp.float32) * 0.1     # sSE conv
    bs = jax.random.normal(k[6], (C,), dtype=jnp.float32) * 0.1

    out = scse_forward(x, w1, b1, w2, b2, ws, bs)
    out = jax.block_until_ready(out)

    ref = scse_reference(x, w1, b1, w2, b2, ws, bs)
    assert out.shape == (N, C, H, W)
    assert jnp.allclose(out, ref, atol=1e-4, rtol=1e-4), \
        f"mismatch: max abs diff = {jnp.max(jnp.abs(out - ref))}"

    print("KERNEL_OK")
</pallas_src>

<mosaic_0001>
module attributes {stable_mosaic.version = 11 : i64} {
  func.func @_scse_fused_kernel(%arg0: i32, %arg1: memref<1x32x256xf32, #tpu.memory_space<vmem>>, %arg2: memref<2x32xf32, #tpu.memory_space<vmem>>, %arg3: memref<2x1xf32, #tpu.memory_space<vmem>>, %arg4: memref<32x2xf32, #tpu.memory_space<vmem>>, %arg5: memref<32x1xf32, #tpu.memory_space<vmem>>, %arg6: memref<32x32xf32, #tpu.memory_space<vmem>>, %arg7: memref<32x1xf32, #tpu.memory_space<vmem>>, %arg8: memref<1x32x256xf32, #tpu.memory_space<vmem>>) attributes {dimension_semantics = [#tpu.dimension_semantics<parallel>], iteration_bounds = array<i64: 2>, scalar_prefetch = 0 : i64, scratch_operands = 0 : i64, tpu.core_type = #tpu.core_type<tc>, window_params = [{transform_indices = @transform_0, window_bounds = array<i64: 1, 32, 256>}, {pipeline_mode = #tpu.pipeline_mode<synchronous>, transform_indices = @transform_1, window_bounds = array<i64: 2, 32>}, {pipeline_mode = #tpu.pipeline_mode<synchronous>, transform_indices = @transform_2, window_bounds = array<i64: 2, 1>}, {pipeline_mode = #tpu.pipeline_mode<synchronous>, transform_indices = @transform_3, window_bounds = array<i64: 32, 2>}, {pipeline_mode = #tpu.pipeline_mode<synchronous>, transform_indices = @transform_4, window_bounds = array<i64: 32, 1>}, {pipeline_mode = #tpu.pipeline_mode<synchronous>, transform_indices = @transform_5, window_bounds = array<i64: 32, 32>}, {pipeline_mode = #tpu.pipeline_mode<synchronous>, transform_indices = @transform_6, window_bounds = array<i64: 32, 1>}, {transform_indices = @transform_7, window_bounds = array<i64: 1, 32, 256>}]} {
    %c0 = arith.constant 0 : index
    %c0_0 = arith.constant 0 : index
    %c0_1 = arith.constant 0 : index
    %0 = vector.load %arg1[%c0, %c0_0, %c0_1] : memref<1x32x256xf32, #tpu.memory_space<vmem>>, vector<1x32x256xf32>
    %1 = vector.shape_cast %0 : vector<1x32x256xf32> to vector<32x256xf32>
    %cst = arith.constant dense<0.000000e+00> : vector<32xf32>
    %2 = vector.multi_reduction <add>, %1, %cst [1] : vector<32x256xf32> to vector<32xf32>
    %3 = vector.shape_cast %2 : vector<32xf32> to vector<32x1xf32>
    %cst_2 = arith.constant 3.906250e-03 : f32
    %4 = vector.broadcast %cst_2 : f32 to vector<32x1xf32>
    %5 = arith.mulf %3, %4 : vector<32x1xf32>
    %c0_3 = arith.constant 0 : index
    %c0_4 = arith.constant 0 : index
    %6 = vector.load %arg2[%c0_3, %c0_4] : memref<2x32xf32, #tpu.memory_space<vmem>>, vector<2x32xf32>
    %cst_5 = arith.constant dense<0.000000e+00> : vector<2x1xf32>
    %7 = tpu.matmul %6, %5, %cst_5 {dimension_numbers = #tpu.dot_dimension_numbers<[1], [0], [0], [1], [0, 0, 1, 1], [], []>} : vector<2x32xf32>, vector<32x1xf32>, vector<2x1xf32> -> vector<2x1xf32>
    %c0_6 = arith.constant 0 : index
    %c0_7 = arith.constant 0 : index
    %8 = vector.load %arg3[%c0_6, %c0_7] : memref<2x1xf32, #tpu.memory_space<vmem>>, vector<2x1xf32>
    %9 = arith.addf %7, %8 : vector<2x1xf32>
    %cst_8 = arith.constant 0.000000e+00 : f32
    %10 = vector.broadcast %cst_8 : f32 to vector<2x1xf32>
    %11 = arith.maximumf %9, %10 : vector<2x1xf32>
    %c0_9 = arith.constant 0 : index
    %c0_10 = arith.constant 0 : index
    %12 = vector.load %arg4[%c0_9, %c0_10] : memref<32x2xf32, #tpu.memory_space<vmem>>, vector<32x2xf32>
    %cst_11 = arith.constant dense<0.000000e+00> : vector<32x1xf32>
    %13 = tpu.matmul %12, %11, %cst_11 {dimension_numbers = #tpu.dot_dimension_numbers<[1], [0], [0], [1], [0, 0, 1, 1], [], []>} : vector<32x2xf32>, vector<2x1xf32>, vector<32x1xf32> -> vector<32x1xf32>
    %c0_12 = arith.constant 0 : index
    %c0_13 = arith.constant 0 : index
    %14 = vector.load %arg5[%c0_12, %c0_13] : memref<32x1xf32, #tpu.memory_space<vmem>>, vector<32x1xf32>
    %15 = arith.addf %13, %14 : vector<32x1xf32>
    %16 = arith.negf %15 : vector<32x1xf32>
    %17 = math.exp %16 : vector<32x1xf32>
    %cst_14 = arith.constant 1.000000e+00 : f32
    %18 = vector.broadcast %cst_14 : f32 to vector<32x1xf32>
    %19 = arith.addf %18, %17 : vector<32x1xf32>
    %20 = arith.divf %18, %19 : vector<32x1xf32>
    %c0_15 = arith.constant 0 : index
    %c0_16 = arith.constant 0 : index
    %21 = vector.load %arg6[%c0_15, %c0_16] : memref<32x32xf32, #tpu.memory_space<vmem>>, vector<32x32xf32>
    %cst_17 = arith.constant dense<0.000000e+00> : vector<32x256xf32>
    %22 = tpu.matmul %21, %1, %cst_17 {dimension_numbers = #tpu.dot_dimension_numbers<[1], [0], [0], [1], [0, 0, 1, 1], [], []>} : vector<32x32xf32>, vector<32x256xf32>, vector<32x256xf32> -> vector<32x256xf32>
    %c0_18 = arith.constant 0 : index
    %c0_19 = arith.constant 0 : index
    %23 = vector.load %arg7[%c0_18, %c0_19] : memref<32x1xf32, #tpu.memory_space<vmem>>, vector<32x1xf32>
    %24 = vector.broadcast %23 : vector<32x1xf32> to vector<32x256xf32>
    %25 = arith.addf %22, %24 : vector<32x256xf32>
    %26 = arith.negf %25 : vector<32x256xf32>
    %27 = math.exp %26 : vector<32x256xf32>
    %cst_20 = arith.constant 1.000000e+00 : f32
    %28 = vector.broadcast %cst_20 : f32 to vector<32x256xf32>
    %29 = arith.addf %28, %27 : vector<32x256xf32>
    %30 = arith.divf %28, %29 : vector<32x256xf32>
    %31 = vector.broadcast %20 : vector<32x1xf32> to vector<32x256xf32>
    %32 = arith.addf %31, %30 : vector<32x256xf32>
    %33 = arith.mulf %1, %32 : vector<32x256xf32>
    %c0_21 = arith.constant 0 : index
    %c0_22 = arith.constant 0 : index
    %c0_23 = arith.constant 0 : index
    %34 = vector.load %arg8[%c0_21, %c0_22, %c0_23] : memref<1x32x256xf32, #tpu.memory_space<vmem>>, vector<1x32x256xf32>
    %35 = vector.shape_cast %34 : vector<1x32x256xf32> to vector<32x256xf32>
    %36 = vector.shape_cast %33 : vector<32x256xf32> to vector<1x32x256xf32>
    tpu.vector_store %arg8[%c0_21, %c0_22, %c0_23], %36 {strides = array<i32>} : memref<1x32x256xf32, #tpu.memory_space<vmem>>, vector<1x32x256xf32>,
    return
  }
  func.func @transform_0(%arg0: i32) -> (i32, i32, i32) {
    %c0_i32 = arith.constant 0 : i32
    %c0_i32_0 = arith.constant 0 : i32
    %c0_i32_1 = arith.constant 0 : i32
    return %arg0, %c0_i32, %c0_i32_0 : i32, i32, i32
  }
  func.func @transform_1(%arg0: i32) -> (i32, i32) {
    %c0_i32 = arith.constant 0 : i32
    %c0_i32_0 = arith.constant 0 : i32
    %c0_i32_1 = arith.constant 0 : i32
    return %c0_i32, %c0_i32_0 : i32, i32
  }
  func.func @transform_2(%arg0: i32) -> (i32, i32) {
    %c0_i32 = arith.constant 0 : i32
    %c0_i32_0 = arith.constant 0 : i32
    %c0_i32_1 = arith.constant 0 : i32
    return %c0_i32, %c0_i32_0 : i32, i32
  }
  func.func @transform_3(%arg0: i32) -> (i32, i32) {
    %c0_i32 = arith.constant 0 : i32
    %c0_i32_0 = arith.constant 0 : i32
    %c0_i32_1 = arith.constant 0 : i32
    return %c0_i32, %c0_i32_0 : i32, i32
  }
  func.func @transform_4(%arg0: i32) -> (i32, i32) {
    %c0_i32 = arith.constant 0 : i32
    %c0_i32_0 = arith.constant 0 : i32
    %c0_i32_1 = arith.constant 0 : i32
    return %c0_i32, %c0_i32_0 : i32, i32
  }
  func.func @transform_5(%arg0: i32) -> (i32, i32) {
    %c0_i32 = arith.constant 0 : i32
    %c0_i32_0 = arith.constant 0 : i32
    %c0_i32_1 = arith.constant 0 : i32
    return %c0_i32, %c0_i32_0 : i32, i32
  }
  func.func @transform_6(%arg0: i32) -> (i32, i32) {
    %c0_i32 = arith.constant 0 : i32
    %c0_i32_0 = arith.constant 0 : i32
    %c0_i32_1 = arith.constant 0 : i32
    return %c0_i32, %c0_i32_0 : i32, i32
  }
  func.func @transform_7(%arg0: i32) -> (i32, i32, i32) {
    %c0_i32 = arith.constant 0 : i32
    %c0_i32_0 = arith.constant 0 : i32
    %c0_i32_1 = arith.constant 0 : i32
    return %arg0, %c0_i32, %c0_i32_0 : i32, i32, i32
  }
}

</mosaic_0001>

<llo_original>
// kernel: tpu_custom_call.1
$region0: #{tpu_custom_call.1}
  #allocation0 [shape = 'u32[]', space=smem, size = 0x4, offset = 0x4, fixed_abs, tag = 'smem constant byte address 0x4 - core index']
  #allocation1 [shape = 'u32[144,128]{1,0:T(1,128)}', space=vmem, size = 0x12000, scoped, tag = 'internal scratch']
  %s0 = inlined_call_operand.hbm [shape: f32[2,32,256], index: 0, kind: input, shape index: {}]
  %s1 = inlined_call_operand.vmem [shape: f32[2,32], index: 1, kind: input, shape index: {}]
  %s2 = inlined_call_operand.vmem [shape: f32[2,1], index: 2, kind: input, shape index: {}]
  %s3 = inlined_call_operand.vmem [shape: f32[32,2], index: 3, kind: input, shape index: {}]
  %s4 = inlined_call_operand.vmem [shape: f32[32,1], index: 4, kind: input, shape index: {}]
  %s5 = inlined_call_operand.vmem [shape: f32[32,32], index: 5, kind: input, shape index: {}]
  %s6 = inlined_call_operand.vmem [shape: f32[32,1], index: 6, kind: input, shape index: {}]
  %s7 = inlined_call_operand.hbm [shape: f32[2,32,256], index: 7, kind: output, shape index: {}]
  %s8 = sld [smem:[#allocation0]]
  $region65: #{tpu_custom_call.1} parent=0
    _
  %s10 = ssub.s32 1, %s8
  %s11 = scalar_select 0, %s10, %s8
  $region1: #{tpu_custom_call.1} parent=0
    #allocation2 [shape = 'u8[65536]{0}', space=vmem, size = 0x10000, scoped, tag = 'input window, operand 0']
    #allocation3 [shape = 's32[2]{0}', space=sflag, size = 0x8, scoped, tag = 'scoped memory for tpu_custom_call.1']
    #allocation4 [shape = 's32[2]{0}', space=sflag, size = 0x8, scoped, tag = 'scoped memory for tpu_custom_call.1']
    #allocation5 [shape = 'u8[65536]{0}', space=vmem, size = 0x10000, scoped, tag = 'output window, operand 0']
    %12 = vsyncpa [#allocation3], 0
    %s13 = scalar_lea.sflag [#allocation3], 1
    %14 = vsyncpa %s13, 0
    %15 = vsyncpa [#allocation4], 0
    %s16 = scalar_lea.sflag [#allocation4], 1
    %17 = vsyncpa %s16, 0
    loop: start=0, step=1, limit=4
    $region2: #{tpu_custom_call.1} parent=1 // loop_pre_header
      _
    $region3: #{tpu_custom_call.1} parent=1 // loop_header
      %s19 = sphi 0, %s23
      %p20 = scmp.ge.s32.totalorder %s19, 4
      %s29 = sphi 0, %s31
      %s32 = sphi 0, %s29
      %s33 = sphi 0, %s32
      %s49 = sphi 0, %s33
      %s53 = sphi 0, %s53
      %s55 = sphi 0, %s53
      %s56 = sphi 0, %s55
      %s70 = sphi 0, %s56
      %s74 = sphi 0, %s74
      %s76 = sphi 0, %s74
      %s77 = sphi 0, %s76
      %s91 = sphi 0, %s77
      %s95 = sphi 0, %s95
      %s97 = sphi 0, %s95
      %s98 = sphi 0, %s97
      %s112 = sphi 0, %s98
      %s116 = sphi 0, %s116
      %s118 = sphi 0, %s116
      %s119 = sphi 0, %s118
      %s133 = sphi 0, %s119
      %s137 = sphi 0, %s137
      %s139 = sphi 0, %s137
      %s140 = sphi 0, %s139
      %s154 = sphi 0, %s140
      %s158 = sphi 0, %s158
      %s160 = sphi 0, %s158
      %s161 = sphi 0, %s160
      %s175 = sphi 0, %s161
      %s181 = sphi 0, %s183
      %s184 = sphi 0, %s181
      %s185 = sphi 0, %s184
      %s201 = sphi 0, %s185
    $region4: #{tpu_custom_call.1} parent=1 // loop_header_branch
      %22 = sbr.rel (%p20) target = $region8
    $region5: #{tpu_custom_call.1} parent=1 // loop_body
      %s24 = ssub.s32 %s19, 1
      %s25 = ssub.s32 %s19, 2
      %s26 = sadd.s32 %s19, 1
      %s27 = ssub.s32 %s19, %s26
      %p28 = scmp.eq.s32.totalorder %s27, 0
      %s30 = sadd.s32 %s29, 1
      %s31 = scalar_select %p28, %s29, %s30
      %p34 = pneg %p28
      %p35 = scmp.eq.s32.totalorder %s19, 1
      %p36 = por %p34, %p35
      %p37 = scmp.ne.s32.totalorder %s29, %s32
      %p38 = scmp.eq.s32.totalorder %s19, 0
      %p39 = por %p37, %p38
      %p40 = scmp.ne.s32.totalorder %s29, %s32
      %p41 = scmp.eq.s32.totalorder %s24, 1
      %p42 = por %p40, %p41
      %p43 = scmp.ne.s32.totalorder %s32, %s33
      %p44 = scmp.eq.s32.totalorder %s24, 0
      %p45 = por %p43, %p44
      %p46 = scmp.ne.s32.totalorder %s32, %s33
      %p47 = scmp.eq.s32.totalorder %s25, 1
      %p48 = por %p46, %p47
      %p50 = scmp.ne.s32.totalorder %s33, %s49
      %p51 = scmp.eq.s32.totalorder %s25, 0
      %p52 = por %p50, %p51
      %s54 = sadd.s32 %s53, 1
      %p57 = scmp.eq.s32.totalorder %s19, 1
      %p58 = scmp.ne.s32.totalorder %s53, %s55
      %p59 = scmp.eq.s32.totalorder %s19, 0
      %p60 = por %p58, %p59
      %p61 = scmp.ne.s32.totalorder %s53, %s55
      %p62 = scmp.eq.s32.totalorder %s24, 1
      %p63 = por %p61, %p62
      %p64 = scmp.ne.s32.totalorder %s55, %s56
      %p65 = scmp.eq.s32.totalorder %s24, 0
      %p66 = por %p64, %p65
      %p67 = scmp.ne.s32.totalorder %s55, %s56
      %p68 = scmp.eq.s32.totalorder %s25, 1
      %p69 = por %p67, %p68
      %p71 = scmp.ne.s32.totalorder %s56, %s70
      %p72 = scmp.eq.s32.totalorder %s25, 0
      %p73 = por %p71, %p72
      %s75 = sadd.s32 %s74, 1
      %p78 = scmp.eq.s32.totalorder %s19, 1
      %p79 = scmp.ne.s32.totalorder %s74, %s76
      %p80 = scmp.eq.s32.totalorder %s19, 0
      %p81 = por %p79, %p80
      %p82 = scmp.ne.s32.totalorder %s74, %s76
      %p83 = scmp.eq.s32.totalorder %s24, 1
      %p84 = por %p82, %p83
      %p85 = scmp.ne.s32.totalorder %s76, %s77
      %p86 = scmp.eq.s32.totalorder %s24, 0
      %p87 = por %p85, %p86
      %p88 = scmp.ne.s32.totalorder %s76, %s77
      %p89 = scmp.eq.s32.totalorder %s25, 1
      %p90 = por %p88, %p89
      %p92 = scmp.ne.s32.totalorder %s77, %s91
      %p93 = scmp.eq.s32.totalorder %s25, 0
      %p94 = por %p92, %p93
      %s96 = sadd.s32 %s95, 1
      %p99 = scmp.eq.s32.totalorder %s19, 1
      %p100 = scmp.ne.s32.totalorder %s95, %s97
      %p101 = scmp.eq.s32.totalorder %s19, 0
      %p102 = por %p100, %p101
      %p103 = scmp.ne.s32.totalorder %s95, %s97
      %p104 = scmp.eq.s32.totalorder %s24, 1
      %p105 = por %p103, %p104
      %p106 = scmp.ne.s32.totalorder %s97, %s98
      %p107 = scmp.eq.s32.totalorder %s24, 0
      %p108 = por %p106, %p107
      %p109 = scmp.ne.s32.totalorder %s97, %s98
      %p110 = scmp.eq.s32.totalorder %s25, 1
      %p111 = por %p109, %p110
      %p113 = scmp.ne.s32.totalorder %s98, %s112
      %p114 = scmp.eq.s32.totalorder %s25, 0
      %p115 = por %p113, %p114
      %s117 = sadd.s32 %s116, 1
      %p120 = scmp.eq.s32.totalorder %s19, 1
      %p121 = scmp.ne.s32.totalorder %s116, %s118
      %p122 = scmp.eq.s32.totalorder %s19, 0
      %p123 = por %p121, %p122
      %p124 = scmp.ne.s32.totalorder %s116, %s118
      %p125 = scmp.eq.s32.totalorder %s24, 1
      %p126 = por %p124, %p125
      %p127 = scmp.ne.s32.totalorder %s118, %s119
      %p128 = scmp.eq.s32.totalorder %s24, 0
      %p129 = por %p127, %p128
      %p130 = scmp.ne.s32.totalorder %s118, %s119
      %p131 = scmp.eq.s32.totalorder %s25, 1
      %p132 = por %p130, %p131
      %p134 = scmp.ne.s32.totalorder %s119, %s133
      %p135 = scmp.eq.s32.totalorder %s25, 0
      %p136 = por %p134, %p135
      %s138 = sadd.s32 %s137, 1
      %p141 = scmp.eq.s32.totalorder %s19, 1
      %p142 = scmp.ne.s32.totalorder %s137, %s139
      %p143 = scmp.eq.s32.totalorder %s19, 0
      %p144 = por %p142, %p143
      %p145 = scmp.ne.s32.totalorder %s137, %s139
      %p146 = scmp.eq.s32.totalorder %s24, 1
      %p147 = por %p145, %p146
      %p148 = scmp.ne.s32.totalorder %s139, %s140
      %p149 = scmp.eq.s32.totalorder %s24, 0
      %p150 = por %p148, %p149
      %p151 = scmp.ne.s32.totalorder %s139, %s140
      %p152 = scmp.eq.s32.totalorder %s25, 1
      %p153 = por %p151, %p152
      %p155 = scmp.ne.s32.totalorder %s140, %s154
      %p156 = scmp.eq.s32.totalorder %s25, 0
      %p157 = por %p155, %p156
      %s159 = sadd.s32 %s158, 1
      %p162 = scmp.eq.s32.totalorder %s19, 1
      %p163 = scmp.ne.s32.totalorder %s158, %s160
      %p164 = scmp.eq.s32.totalorder %s19, 0
      %p165 = por %p163, %p164
      %p166 = scmp.ne.s32.totalorder %s158, %s160
      %p167 = scmp.eq.s32.totalorder %s24, 1
      %p168 = por %p166, %p167
      %p169 = scmp.ne.s32.totalorder %s160, %s161
      %p170 = scmp.eq.s32.totalorder %s24, 0
      %p171 = por %p169, %p170
      %p172 = scmp.ne.s32.totalorder %s160, %s161
      %p173 = scmp.eq.s32.totalorder %s25, 1
      %p174 = por %p172, %p173
      %p176 = scmp.ne.s32.totalorder %s161, %s175
      %p177 = scmp.eq.s32.totalorder %s25, 0
      %p178 = por %p176, %p177
      %s179 = ssub.s32 %s19, %s26
      %p180 = scmp.eq.s32.totalorder %s179, 0
      %s182 = sadd.s32 %s181, 1
      %s183 = scalar_select %p180, %s181, %s182
      %p186 = pneg %p180
      %p187 = scmp.eq.s32.totalorder %s19, 1
      %p188 = por %p186, %p187
      %p189 = scmp.ne.s32.totalorder %s181, %s184
      %p190 = scmp.eq.s32.totalorder %s19, 0
      %p191 = por %p189, %p190
      %p192 = scmp.ne.s32.totalorder %s181, %s184
      %p193 = scmp.eq.s32.totalorder %s24, 1
      %p194 = por %p192, %p193
      %p195 = scmp.ne.s32.totalorder %s184, %s185
      %p196 = scmp.eq.s32.totalorder %s24, 0
      %p197 = por %p195, %p196
      %p198 = scmp.ne.s32.totalorder %s184, %s185
      %p199 = scmp.eq.s32.totalorder %s25, 1
      %p200 = por %p198, %p199
      %p202 = scmp.ne.s32.totalorder %s185, %s201
      %p203 = scmp.eq.s32.totalorder %s25, 0
      %p204 = por %p202, %p203
      %p205 = scmp.le.s32.totalorder 1, %s19
      %p206 = scmp.lt.s32.totalorder %s19, 3
      %p207 = pnand %p205, %p206
      %p208 = pneg %p207
      // Predicated region
      $region9: #{tpu_custom_call.1} parent=5 // pred_check
        _
      $region10: #{tpu_custom_call.1} parent=5 // pred_check_branch
        %210 = sbr.rel (%p207) target = $region12
      $region11: #{tpu_custom_call.1} parent=5 // pred_region
        %s211 = ssub.s32 %s19, 1
        // Predicated region
        $region13: #{tpu_custom_call.1} parent=11 // pred_check
          %p212 = pneg %p66
        $region14: #{tpu_custom_call.1} parent=11 // pred_check_branch
          %214 = sbr.rel (%p212) target = $region16
        $region15: #{tpu_custom_call.1} parent=11 // pred_region
          _
        $region16: #{tpu_custom_call.1} parent=11 // pred_fallthru
          _
        // Predicated region
        $region17: #{tpu_custom_call.1} parent=11 // pred_check
          %p215 = pneg %p87
        $region18: #{tpu_custom_call.1} parent=11 // pred_check_branch
          %217 = sbr.rel (%p215) target = $region20
        $region19: #{tpu_custom_call.1} parent=11 // pred_region
          _
        $region20: #{tpu_custom_call.1} parent=11 // pred_fallthru
          _
        // Predicated region
        $region21: #{tpu_custom_call.1} parent=11 // pred_check
          %p218 = pneg %p108
        $region22: #{tpu_custom_call.1} parent=11 // pred_check_branch
          %220 = sbr.rel (%p218) target = $region24
        $region23: #{tpu_custom_call.1} parent=11 // pred_region
          _
        $region24: #{tpu_custom_call.1} parent=11 // pred_fallthru
          _
        // Predicated region
        $region25: #{tpu_custom_call.1} parent=11 // pred_check
          %p221 = pneg %p129
        $region26: #{tpu_custom_call.1} parent=11 // pred_check_branch
          %223 = sbr.rel (%p221) target = $region28
        $region27: #{tpu_custom_call.1} parent=11 // pred_region
          _
        $region28: #{tpu_custom_call.1} parent=11 // pred_fallthru
          _
        // Predicated region
        $region29: #{tpu_custom_call.1} parent=11 // pred_check
          %p224 = pneg %p150
        $region30: #{tpu_custom_call.1} parent=11 // pred_check_branch
          %226 = sbr.rel (%p224) target = $region32
        $region31: #{tpu_custom_call.1} parent=11 // pred_region
          _
        $region32: #{tpu_custom_call.1} parent=11 // pred_fallthru
          _
        // Predicated region
        $region33: #{tpu_custom_call.1} parent=11 // pred_check
          %p227 = pneg %p171
        $region34: #{tpu_custom_call.1} parent=11 // pred_check_branch
          %229 = sbr.rel (%p227) target = $region36
        $region35: #{tpu_custom_call.1} parent=11 // pred_region
          _
        $region36: #{tpu_custom_call.1} parent=11 // pred_fallthru
          _
      $region12: #{tpu_custom_call.1} parent=5 // pred_fallthru
        _
      %p230 = scmp.lt.s32.totalorder %s19, 2
      // Predicated region
      $region37: #{tpu_custom_call.1} parent=5 // pred_check
        %p231 = pneg %p230
      $region38: #{tpu_custom_call.1} parent=5 // pred_check_branch
        %233 = sbr.rel (%p231) target = $region40
      $region39: #{tpu_custom_call.1} parent=5 // pred_region
        // Predicated region
        $region41: #{tpu_custom_call.1} parent=39 // pred_check
          %p234 = pneg %p39
        $region42: #{tpu_custom_call.1} parent=39 // pred_check_branch
          %236 = sbr.rel (%p234) target = $region44
        $region43: #{tpu_custom_call.1} parent=39 // pred_region
          %s237 = sand.u32 %s29, 1
          %s238 = scalar_lea.sflag [#allocation3], %s237
          %s239 = sand.u32 %s29, 1
          %s240 = smul.addr %s239, 64
          %s241 = scalar_lea.vmem [#allocation2], %s240
          %s243 = ssub.s32 1024, 1024
          %244 = vsyncadd %s238, %s243
          %s245 = smul.addr %s19, 8
          %s246 = smul.addr %s245, 128
          %s247 = scalar_lea.hbm %s0, %s246
          %s248 = sshll.u32 %s241, 4
          %s249 = int_to_ptr.vmem [resolvable:$true] %s248
          %254 = dma.hbm_to_vmem [thread:$0]  %s247, 1024, %s249, %s238, 256, 256, 16
        $region44: #{tpu_custom_call.1} parent=39 // pred_fallthru
          _
      $region40: #{tpu_custom_call.1} parent=5 // pred_fallthru
        _
      %p255 = scmp.le.s32.totalorder 1, %s19
      %p256 = scmp.lt.s32.totalorder %s19, 3
      %p257 = pnand %p255, %p256
      %p258 = pneg %p257
      // Predicated region
      $region45: #{tpu_custom_call.1} parent=5 // pred_check
        _
      $region46: #{tpu_custom_call.1} parent=5 // pred_check_branch
        %260 = sbr.rel (%p257) target = $region48
      $region47: #{tpu_custom_call.1} parent=5 // pred_region
        %s261 = ssub.s32 %s19, 1
        %s262 = sand.u32 %s32, 1
        %s263 = scalar_lea.sflag [#allocation3], %s262
        %s264 = sand.u32 %s32, 1
        %s265 = smul.addr %s264, 64
        %s266 = scalar_lea.vmem [#allocation2], %s265
        // Predicated region
        $region49: #{tpu_custom_call.1} parent=47 // pred_check
          %p267 = pneg %p45
        $region50: #{tpu_custom_call.1} parent=47 // pred_check_branch
          %269 = sbr.rel (%p267) target = $region52
        $region51: #{tpu_custom_call.1} parent=47 // pred_region
          %270 = dma.done %s263, 1024
        $region52: #{tpu_custom_call.1} parent=47 // pred_fallthru
          _
        %s271 = sand.u32 %s32, 1
        %s272 = scalar_lea.sflag [#allocation3], %s271
        %s273 = sand.u32 %s32, 1
        %s274 = smul.addr %s273, 64
        %s275 = scalar_lea.vmem [#allocation2], %s274
        %p276 = pneg %p45
        %p277 = pneg %p42
        %p278 = pneg %p66
        %p279 = pneg %p63
        %p280 = pneg %p87
        %p281 = pneg %p84
        %p282 = pneg %p108
        %p283 = pneg %p105
        %p284 = pneg %p129
        %p285 = pneg %p126
        %p286 = pneg %p150
        %p287 = pneg %p147
        %p288 = pneg %p171
        %p289 = pneg %p168
        %p290 = pneg %p197
        %p291 = pneg %p194
        %s292 = sand.u32 %s184, 1
        %s293 = scalar_lea.sflag [#allocation4], %s292
        %s294 = sand.u32 %s184, 1
        %s295 = smul.addr %s294, 64
        %s296 = scalar_lea.vmem [#allocation5], %s295
        %v297 = vld [vmem:[%s266] sm:$0xff]
        %v298 = vld [vmem:[%s266 + $0x8] sm:$0xff]
        %v299 = vld [vmem:[%s266 + $0x10] sm:$0xff]
        %v300 = vld [vmem:[%s266 + $0x18] sm:$0xff]
        %v301 = vld [vmem:[%s266 + $0x20] sm:$0xff]
        %v302 = vld [vmem:[%s266 + $0x28] sm:$0xff]
        %v303 = vld [vmem:[%s266 + $0x30] sm:$0xff]
        %v304 = vld [vmem:[%s266 + $0x38] sm:$0xff]
        %v305 = vadd.f32 %v297, %v298
        %306 = vadd.xlane.f32.xlu0 %v305
        %v307 = vpop.xlane.xlu0 %306
        %v308 = vadd.f32 %v299, %v300
        %309 = vadd.xlane.f32.xlu0 %v308
        %v310 = vpop.xlane.xlu0 %309
        %v311 = vadd.f32 %v301, %v302
        %312 = vadd.xlane.f32.xlu0 %v311
        %v313 = vpop.xlane.xlu0 %312
        %v314 = vadd.f32 %v303, %v304
        %315 = vadd.xlane.f32.xlu0 %v314
        %v316 = vpop.xlane.xlu0 %315
        %v317 = vmul.f32 %v307, 0.00390625
        %v318 = vmul.f32 %v310, 0.00390625
        %v319 = vmul.f32 %v313, 0.00390625
        %v320 = vmul.f32 %v316, 0.00390625
        %v321 = vld [vmem:[%s1] sm:$0x3]
        %v322 = vld [vmem:[%s2] sm:$0x3]
        %vm323 = vcmask 261120
        %v325 = vsel %vm323, %v321, 0
        %327 = vmatprep.subr.mxu0 0.0
        %328 = vmatpush1.msra.mxu0 %v317
        %329 = vmatprep.subr.mxu0 0.0
        %330 = vmatpush1.msra.mxu0 %v318
        %331 = vmatprep.subr.mxu0 0.0
        %332 = vmatpush1.msra.mxu0 %v319
        %333 = vmatprep.subr.mxu0 0.0
        %334 = vmatpush1.msra.mxu0 %v320
        %335 = vmatprep.subr.mxu0 0.0
        %336 = vmatpush1.msra.mxu0 0.0
        %337 = vmatprep.subr.mxu0 0.0
        %338 = vmatpush1.msra.mxu0 0.0
        %339 = vmatprep.subr.mxu0 0.0
        %340 = vmatpush1.msra.mxu0 0.0
        %341 = vmatprep.subr.mxu0 0.0
        %342 = vmatpush1.msra.mxu0 0.0
        %343 = vmatprep.subr.mxu0 0.0
        %344 = vmatpush1.msra.mxu0 0.0
        %345 = vmatprep.subr.mxu0 0.0
        %346 = vmatpush1.msra.mxu0 0.0
        %347 = vmatprep.subr.mxu0 0.0
        %348 = vmatpush1.msra.mxu0 0.0
        %349 = vmatprep.subr.mxu0 0.0
        %350 = vmatpush1.msra.mxu0 0.0
        %351 = vmatprep.subr.mxu0 0.0
        %352 = vmatpush1.msra.mxu0 0.0
        %353 = vmatprep.subr.mxu0 0.0
        %354 = vmatpush1.msra.mxu0 0.0
        %355 = vmatprep.subr.mxu0 0.0
        %356 = vmatpush1.msra.mxu0 0.0
        %357 = vmatprep.subr.mxu0 0.0
        %358 = vmatpush1.msra.mxu0 0.0
        %359 = vmatprep.subr.mxu0 0.0
        %360 = vmatpush1.msra.mxu0 0.0
        %361 = vmatprep.subr.mxu0 0.0
        %362 = vmatpush1.msra.mxu0 0.0
        %363 = vmatprep.subr.mxu0 0.0
        %364 = vmatpush1.msra.mxu0 0.0
        %365 = vmatprep.subr.mxu0 0.0
        %366 = vmatpush1.msra.mxu0 0.0
        %367 = vmatprep.subr.mxu0 0.0
        %368 = vmatpush1.msra.mxu0 0.0
        %369 = vmatprep.subr.mxu0 0.0
        %370 = vmatpush1.msra.mxu0 0.0
        %371 = vmatprep.subr.mxu0 0.0
        %372 = vmatpush1.msra.mxu0 0.0
        %373 = vmatprep.subr.mxu0 0.0
        %374 = vmatpush1.msra.mxu0 0.0
        %375 = vmatprep.subr.mxu0 0.0
        %376 = vmatpush1.msra.mxu0 0.0
        %377 = vmatprep.subr.mxu0 0.0
        %378 = vmatpush1.msra.mxu0 0.0
        %379 = vmatprep.subr.mxu0 0.0
        %380 = vmatpush1.msra.mxu0 0.0
        %381 = vmatprep.subr.mxu0 0.0
        %382 = vmatpush1.msra.mxu0 0.0
        %383 = vmatprep.subr.mxu0 0.0
        %384 = vmatpush1.msra.mxu0 0.0
        %385 = vmatprep.subr.mxu0 0.0
        %386 = vmatpush1.msra.mxu0 0.0
        %387 = vmatprep.subr.mxu0 0.0
        %388 = vmatpush1.msra.mxu0 0.0
        %389 = vmatprep.subr.mxu0 0.0
        %390 = vmatpush1.msra.mxu0 0.0
        %391 = vmatprep.mubr.f32.mxu0 0.0
        %392 = vmatmul.mubr.f32.gmra.mrb[0].mxu0 %v325
        %v393 = vpop.f32.mrb[0].mxu0
        %v394 = vadd.f32 %v322, %v393
        %v395 = vpop.f32.mrb[0].mxu0
        %396 = vdwg.mxu0
        %v397 = vmax.f32 %v394, 0.0
        %v398 = vld [vmem:[%s3] sm:$0xff]
        %v399 = vld [vmem:[%s3 + $0x8] sm:$0xff]
        %v400 = vld [vmem:[%s3 + $0x10] sm:$0xff]
        %v401 = vld [vmem:[%s3 + $0x18] sm:$0xff]
        %v402 = vld [vmem:[%s4] sm:$0xff]
        %v403 = vld [vmem:[%s4 + $0x8] sm:$0xff]
        %v404 = vld [vmem:[%s4 + $0x10] sm:$0xff]
        %v405 = vld [vmem:[%s4 + $0x18] sm:$0xff]
        %vm406 = vcmask 15360
        %v408 = vsel %vm406, %v398, 0
        %v411 = vsel %vm406, %v399, 0
        %v414 = vsel %vm406, %v400, 0
        %v417 = vsel %vm406, %v401, 0
        %vm419 = vcmask 1041408
        %v421 = vsel %vm419, %v397, 0
        %423 = vmatprep.subr.mxu0 0.0
        %424 = vmatpush1.msra.mxu0 %v421
        %425 = vmatprep.subr.mxu0 0.0
        %426 = vmatpush1.msra.mxu0 0.0
        %427 = vmatprep.subr.mxu0 0.0
        %428 = vmatpush1.msra.mxu0 0.0
        %429 = vmatprep.subr.mxu0 0.0
        %430 = vmatpush1.msra.mxu0 0.0
        %431 = vmatprep.subr.mxu0 0.0
        %432 = vmatpush1.msra.mxu0 0.0
        %433 = vmatprep.subr.mxu0 0.0
        %434 = vmatpush1.msra.mxu0 0.0
        %435 = vmatprep.subr.mxu0 0.0
        %436 = vmatpush1.msra.mxu0 0.0
        %437 = vmatprep.subr.mxu0 0.0
        %438 = vmatpush1.msra.mxu0 0.0
        %439 = vmatprep.subr.mxu0 0.0
        %440 = vmatpush1.msra.mxu0 0.0
        %441 = vmatprep.subr.mxu0 0.0
        %442 = vmatpush1.msra.mxu0 0.0
        %443 = vmatprep.subr.mxu0 0.0
        %444 = vmatpush1.msra.mxu0 0.0
        %445 = vmatprep.subr.mxu0 0.0
        %446 = vmatpush1.msra.mxu0 0.0
        %447 = vmatprep.subr.mxu0 0.0
        %448 = vmatpush1.msra.mxu0 0.0
        %449 = vmatprep.subr.mxu0 0.0
        %450 = vmatpush1.msra.mxu0 0.0
        %451 = vmatprep.subr.mxu0 0.0
        %452 = vmatpush1.msra.mxu0 0.0
        %453 = vmatprep.subr.mxu0 0.0
        %454 = vmatpush1.msra.mxu0 0.0
        %455 = vmatprep.subr.mxu0 0.0
        %456 = vmatpush1.msra.mxu0 0.0
        %457 = vmatprep.subr.mxu0 0.0
        %458 = vmatpush1.msra.mxu0 0.0
        %459 = vmatprep.subr.mxu0 0.0
        %460 = vmatpush1.msra.mxu0 0.0
        %461 = vmatprep.subr.mxu0 0.0
        %462 = vmatpush1.msra.mxu0 0.0
        %463 = vmatprep.subr.mxu0 0.0
        %464 = vmatpush1.msra.mxu0 0.0
        %465 = vmatprep.subr.mxu0 0.0
        %466 = vmatpush1.msra.mxu0 0.0
        %467 = vmatprep.subr.mxu0 0.0
        %468 = vmatpush1.msra.mxu0 0.0
        %469 = vmatprep.subr.mxu0 0.0
        %470 = vmatpush1.msra.mxu0 0.0
        %471 = vmatprep.subr.mxu0 0.0
        %472 = vmatpush1.msra.mxu0 0.0
        %473 = vmatprep.subr.mxu0 0.0
        %474 = vmatpush1.msra.mxu0 0.0
        %475 = vmatprep.subr.mxu0 0.0
        %476 = vmatpush1.msra.mxu0 0.0
        %477 = vmatprep.subr.mxu0 0.0
        %478 = vmatpush1.msra.mxu0 0.0
        %479 = vmatprep.subr.mxu0 0.0
        %480 = vmatpush1.msra.mxu0 0.0
        %481 = vmatprep.subr.mxu0 0.0
        %482 = vmatpush1.msra.mxu0 0.0
        %483 = vmatprep.subr.mxu0 0.0
        %484 = vmatpush1.msra.mxu0 0.0
        %485 = vmatprep.subr.mxu0 0.0
        %486 = vmatpush1.msra.mxu0 0.0
        %487 = vmatprep.mubr.f32.mxu0 0.0
        %488 = vmatmul.mubr.f32.gmra.mrb[0].mxu0 %v408
        %v489 = vpop.f32.mrb[0].mxu0
        %v490 = vadd.f32 %v402, %v489
        %v491 = vpop.f32.mrb[0].mxu0
        %492 = vmatprep.mubr.f32.mxu0 0.0
        %493 = vmatmul.mubr.f32.gmra.mrb[0].mxu0 %v411
        %v494 = vpop.f32.mrb[0].mxu0
        %v495 = vadd.f32 %v403, %v494
        %v496 = vpop.f32.mrb[0].mxu0
        %497 = vmatprep.mubr.f32.mxu0 0.0
        %498 = vmatmul.mubr.f32.gmra.mrb[0].mxu0 %v414
        %v499 = vpop.f32.mrb[0].mxu0
        %v500 = vadd.f32 %v404, %v499
        %v501 = vpop.f32.mrb[0].mxu0
        %502 = vmatprep.mubr.f32.mxu0 0.0
        %503 = vmatmul.mubr.f32.gmra.mrb[0].mxu0 %v417
        %v504 = vpop.f32.mrb[0].mxu0
        %v505 = vadd.f32 %v405, %v504
        %v506 = vpop.f32.mrb[0].mxu0
        %507 = vdwg.mxu0
        %v508 = vxor.u32 %v490, 2147483648
        %v509 = vxor.u32 %v495, 2147483648
        %v510 = vxor.u32 %v500, 2147483648
        %v511 = vxor.u32 %v505, 2147483648
        %v512 = vmul.f32 %v508, 1.442695
        %v513 = vpow.pop %v512
        %v514 = vmul.f32 %v509, 1.442695
        %v515 = vpow.pop %v514
        %v516 = vmul.f32 %v510, 1.442695
        %v517 = vpow.pop %v516
        %v518 = vmul.f32 %v511, 1.442695
        %v519 = vpow.pop %v518
        %v520 = vadd.f32 %v513, 1.0
        %v521 = vadd.f32 %v515, 1.0
        %v522 = vadd.f32 %v517, 1.0
        %v523 = vadd.f32 %v519, 1.0
        %v524 = vrcp.pop %v520
        %v525 = vmul.f32 1.0, %v524
        %v526 = vrcp.pop %v521
        %v527 = vmul.f32 1.0, %v526
        %v528 = vrcp.pop %v522
        %v529 = vmul.f32 1.0, %v528
        %v530 = vrcp.pop %v523
        %v531 = vmul.f32 1.0, %v530
        %v532 = vld [vmem:[%s5] sm:$0xff]
        %v533 = vld [vmem:[%s5 + $0x8] sm:$0xff]
        %v534 = vld [vmem:[%s5 + $0x10] sm:$0xff]
        %v535 = vld [vmem:[%s5 + $0x18] sm:$0xff]
        %v536 = vld [vmem:[%s6] sm:$0xff]
        %v537 = vld [vmem:[%s6 + $0x8] sm:$0xff]
        %v538 = vld [vmem:[%s6 + $0x10] sm:$0xff]
        %v539 = vld [vmem:[%s6 + $0x18] sm:$0xff]
        %541 = vset.pattern.permute.xlu0 0
        %542 = vperm.xlu0 %541, %v536
        %v543 = vpop.permute.xlu0 %542
        %546 = vset.pattern.permute.xlu0 0
        %547 = vperm.xlu0 %546, %v537
        %v548 = vpop.permute.xlu0 %547
        %551 = vset.pattern.permute.xlu0 0
        %552 = vperm.xlu0 %551, %v538
        %v553 = vpop.permute.xlu0 %552
        %556 = vset.pattern.permute.xlu0 0
        %557 = vperm.xlu0 %556, %v539
        %v558 = vpop.permute.xlu0 %557
        %v561 = vsel %vm323, %v532, 0
        %v564 = vsel %vm323, %v533, 0
        %v567 = vsel %vm323, %v534, 0
        %v570 = vsel %vm323, %v535, 0
        %572 = vmatprep.subr.mxu0 %v298
        %573 = vmatpush1.msra.mxu0 %v297
        %574 = vmatprep.subr.mxu0 %v300
        %575 = vmatpush1.msra.mxu0 %v299
        %576 = vmatprep.subr.mxu0 %v302
        %577 = vmatpush1.msra.mxu0 %v301
        %578 = vmatprep.subr.mxu0 %v304
        %579 = vmatpush1.msra.mxu0 %v303
        %580 = vmatprep.subr.mxu0 0.0
        %581 = vmatpush1.msra.mxu0 0.0
        %582 = vmatprep.subr.mxu0 0.0
        %583 = vmatpush1.msra.mxu0 0.0
        %584 = vmatprep.subr.mxu0 0.0
        %585 = vmatpush1.msra.mxu0 0.0
        %586 = vmatprep.subr.mxu0 0.0
        %587 = vmatpush1.msra.mxu0 0.0
        %588 = vmatprep.subr.mxu0 0.0
        %589 = vmatpush1.msra.mxu0 0.0
        %590 = vmatprep.subr.mxu0 0.0
        %591 = vmatpush1.msra.mxu0 0.0
        %592 = vmatprep.subr.mxu0 0.0
        %593 = vmatpush1.msra.mxu0 0.0
        %594 = vmatprep.subr.mxu0 0.0
        %595 = vmatpush1.msra.mxu0 0.0
        %596 = vmatprep.subr.mxu0 0.0
        %597 = vmatpush1.msra.mxu0 0.0
        %598 = vmatprep.subr.mxu0 0.0
        %599 = vmatpush1.msra.mxu0 0.0
        %600 = vmatprep.subr.mxu0 0.0
        %601 = vmatpush1.msra.mxu0 0.0
        %602 = vmatprep.subr.mxu0 0.0
        %603 = vmatpush1.msra.mxu0 0.0
        %604 = vmatprep.subr.mxu0 0.0
        %605 = vmatpush1.msra.mxu0 0.0
        %606 = vmatprep.subr.mxu0 0.0
        %607 = vmatpush1.msra.mxu0 0.0
        %608 = vmatprep.subr.mxu0 0.0
        %609 = vmatpush1.msra.mxu0 0.0
        %610 = vmatprep.subr.mxu0 0.0
        %611 = vmatpush1.msra.mxu0 0.0
        %612 = vmatprep.subr.mxu0 0.0
        %613 = vmatpush1.msra.mxu0 0.0
        %614 = vmatprep.subr.mxu0 0.0
        %615 = vmatpush1.msra.mxu0 0.0
        %616 = vmatprep.subr.mxu0 0.0
        %617 = vmatpush1.msra.mxu0 0.0
        %618 = vmatprep.subr.mxu0 0.0
        %619 = vmatpush1.msra.mxu0 0.0
        %620 = vmatprep.subr.mxu0 0.0
        %621 = vmatpush1.msra.mxu0 0.0
        %622 = vmatprep.subr.mxu0 0.0
        %623 = vmatpush1.msra.mxu0 0.0
        %624 = vmatprep.subr.mxu0 0.0
        %625 = vmatpush1.msra.mxu0 0.0
        %626 = vmatprep.subr.mxu0 0.0
        %627 = vmatpush1.msra.mxu0 0.0
        %628 = vmatprep.subr.mxu0 0.0
        %629 = vmatpush1.msra.mxu0 0.0
        %630 = vmatprep.subr.mxu0 0.0
        %631 = vmatpush1.msra.mxu0 0.0
        %632 = vmatprep.subr.mxu0 0.0
        %633 = vmatpush1.msra.mxu0 0.0
        %634 = vmatprep.subr.mxu0 0.0
        %635 = vmatpush1.msra.mxu0 0.0
        %636 = vmatprep.mubr.f32.mxu0 0.0
        %637 = vmatmul.mubr.f32.gmra.mrb[0].mxu0 %v561
        %v638 = vpop.f32.mrb[0].mxu0
        %v639 = vadd.f32 %v543, %v638
        %v640 = vpop.f32.mrb[0].mxu0
        %v641 = vadd.f32 %v543, %v640
        %642 = vmatprep.mubr.f32.mxu0 0.0
        %643 = vmatmul.mubr.f32.gmra.mrb[0].mxu0 %v564
        %v644 = vpop.f32.mrb[0].mxu0
        %v645 = vadd.f32 %v548, %v644
        %v646 = vpop.f32.mrb[0].mxu0
        %v647 = vadd.f32 %v548, %v646
        %648 = vmatprep.mubr.f32.mxu0 0.0
        %649 = vmatmul.mubr.f32.gmra.mrb[0].mxu0 %v567
        %v650 = vpop.f32.mrb[0].mxu0
        %v651 = vadd.f32 %v553, %v650
        %v652 = vpop.f32.mrb[0].mxu0
        %v653 = vadd.f32 %v553, %v652
        %654 = vmatprep.mubr.f32.mxu0 0.0
        %655 = vmatmul.mubr.f32.gmra.mrb[0].mxu0 %v570
        %v656 = vpop.f32.mrb[0].mxu0
        %v657 = vadd.f32 %v558, %v656
        %v658 = vpop.f32.mrb[0].mxu0
        %v659 = vadd.f32 %v558, %v658
        %660 = vdwg.mxu0
        %v661 = vxor.u32 %v639, 2147483648
        %v662 = vxor.u32 %v641, 2147483648
        %v663 = vxor.u32 %v645, 2147483648
        %v664 = vxor.u32 %v647, 2147483648
        %v665 = vxor.u32 %v651, 2147483648
        %v666 = vxor.u32 %v653, 2147483648
        %v667 = vxor.u32 %v657, 2147483648
        %v668 = vxor.u32 %v659, 2147483648
        %v669 = vmul.f32 %v661, 1.442695
        %v670 = vpow.pop %v669
        %v671 = vmul.f32 %v662, 1.442695
        %v672 = vpow.pop %v671
        %v673 = vmul.f32 %v663, 1.442695
        %v674 = vpow.pop %v673
        %v675 = vmul.f32 %v664, 1.442695
        %v676 = vpow.pop %v675
        %v677 = vmul.f32 %v665, 1.442695
        %v678 = vpow.pop %v677
        %v679 = vmul.f32 %v666, 1.442695
        %v680 = vpow.pop %v679
        %v681 = vmul.f32 %v667, 1.442695
        %v682 = vpow.pop %v681
        %v683 = vmul.f32 %v668, 1.442695
        %v684 = vpow.pop %v683
        %v685 = vadd.f32 %v670, 1.0
        %v686 = vadd.f32 %v672, 1.0
        %v687 = vadd.f32 %v674, 1.0
        %v688 = vadd.f32 %v676, 1.0
        %v689 = vadd.f32 %v678, 1.0
        %v690 = vadd.f32 %v680, 1.0
        %v691 = vadd.f32 %v682, 1.0
        %v692 = vadd.f32 %v684, 1.0
        %v693 = vrcp.pop %v685
        %v694 = vmul.f32 1.0, %v693
        %v695 = vrcp.pop %v686
        %v696 = vmul.f32 1.0, %v695
        %v697 = vrcp.pop %v687
        %v698 = vmul.f32 1.0, %v697
        %v699 = vrcp.pop %v688
        %v700 = vmul.f32 1.0, %v699
        %v701 = vrcp.pop %v689
        %v702 = vmul.f32 1.0, %v701
        %v703 = vrcp.pop %v690
        %v704 = vmul.f32 1.0, %v703
        %v705 = vrcp.pop %v691
        %v706 = vmul.f32 1.0, %v705
        %v707 = vrcp.pop %v692
        %v708 = vmul.f32 1.0, %v707
        %710 = vset.pattern.permute.xlu0 0
        %711 = vperm.xlu0 %710, %v525
        %v712 = vpop.permute.xlu0 %711
        %715 = vset.pattern.permute.xlu0 0
        %716 = vperm.xlu0 %715, %v527
        %v717 = vpop.permute.xlu0 %716
        %720 = vset.pattern.permute.xlu0 0
        %721 = vperm.xlu0 %720, %v529
        %v722 = vpop.permute.xlu0 %721
        %725 = vset.pattern.permute.xlu0 0
        %726 = vperm.xlu0 %725, %v531
        %v727 = vpop.permute.xlu0 %726
        %v729 = vadd.f32 %v712, %v694
        %v730 = vadd.f32 %v712, %v696
        %v731 = vadd.f32 %v717, %v698
        %v732 = vadd.f32 %v717, %v700
        %v733 = vadd.f32 %v722, %v702
        %v734 = vadd.f32 %v722, %v704
        %v735 = vadd.f32 %v727, %v706
        %v736 = vadd.f32 %v727, %v708
        %v737 = vmul.f32 %v297, %v729
        %v738 = vmul.f32 %v298, %v730
        %v739 = vmul.f32 %v299, %v731
        %v740 = vmul.f32 %v300, %v732
        %v741 = vmul.f32 %v301, %v733
        %v742 = vmul.f32 %v302, %v734
        %v743 = vmul.f32 %v303, %v735
        %v744 = vmul.f32 %v304, %v736
        %745 = vst [vmem:[%s296] sm:$0xff] %v737
        %746 = vst [vmem:[%s296 + $0x8] sm:$0xff] %v738
        %747 = vst [vmem:[%s296 + $0x10] sm:$0xff] %v739
        %748 = vst [vmem:[%s296 + $0x18] sm:$0xff] %v740
        %749 = vst [vmem:[%s296 + $0x20] sm:$0xff] %v741
        %750 = vst [vmem:[%s296 + $0x28] sm:$0xff] %v742
        %751 = vst [vmem:[%s296 + $0x30] sm:$0xff] %v743
        %752 = vst [vmem:[%s296 + $0x38] sm:$0xff] %v744
        %s753 = sand.u32 %s184, 1
        %s754 = scalar_lea.sflag [#allocation4], %s753
        %s755 = sand.u32 %s184, 1
        %s756 = smul.addr %s755, 64
        %s757 = scalar_lea.vmem [#allocation5], %s756
        // Predicated region
        $region53: #{tpu_custom_call.1} parent=47 // pred_check
          %p758 = pneg %p194
        $region54: #{tpu_custom_call.1} parent=47 // pred_check_branch
          %760 = sbr.rel (%p758) target = $region56
        $region55: #{tpu_custom_call.1} parent=47 // pred_region
          %s762 = ssub.s32 1024, 1024
          %763 = vsyncadd %s754, %s762
          %s764 = smul.addr %s24, 8
          %s765 = smul.addr %s764, 128
          %s766 = scalar_lea.hbm %s7, %s765
          %s767 = sshll.u32 %s757, 4
          %s768 = int_to_ptr.vmem [resolvable:$true] %s767
          %773 = dma.vmem_to_hbm [thread:$0]  %s768, 1024, %s766, %s754, 256, 256, 16
        $region56: #{tpu_custom_call.1} parent=47 // pred_fallthru
          _
      $region48: #{tpu_custom_call.1} parent=5 // pred_fallthru
        _
      %p774 = scmp.le.s32.totalorder 2, %s19
      // Predicated region
      $region57: #{tpu_custom_call.1} parent=5 // pred_check
        %p775 = pneg %p774
      $region58: #{tpu_custom_call.1} parent=5 // pred_check_branch
        %777 = sbr.rel (%p775) target = $region60
      $region59: #{tpu_custom_call.1} parent=5 // pred_region
        %s778 = ssub.s32 %s19, 2
        // Predicated region
        $region61: #{tpu_custom_call.1} parent=59 // pred_check
          %p779 = pneg %p200
        $region62: #{tpu_custom_call.1} parent=59 // pred_check_branch
          %781 = sbr.rel (%p779) target = $region64
        $region63: #{tpu_custom_call.1} parent=59 // pred_region
          %s782 = sand.u32 %s185, 1
          %s783 = scalar_lea.sflag [#allocation4], %s782
          %s784 = sand.u32 %s185, 1
          %s785 = smul.addr %s784, 64
          %s786 = scalar_lea.vmem [#allocation5], %s785
          %787 = dma.done %s783, 1024
        $region64: #{tpu_custom_call.1} parent=59 // pred_fallthru
          _
      $region60: #{tpu_custom_call.1} parent=5 // pred_fallthru
        _
    $region6: #{tpu_custom_call.1} parent=1 // loop_footer
      %s23 = sadd.s32 1, %s19
    $region7: #{tpu_custom_call.1} parent=1 // loop_footer_branch
      %18 = sbr.rel target = $region3
    $region8: #{tpu_custom_call.1} parent=1 // loop_exit
      _
    %788 = vsyncpa [#allocation3], 1
    %s789 = scalar_lea.sflag [#allocation3], 1
    %790 = vsyncpa %s789, 1
    %791 = vsyncpa [#allocation4], 1
    %s792 = scalar_lea.sflag [#allocation4], 1
    %793 = vsyncpa %s792, 1

</llo_original>
